<compile_context>
chip_gen: v6e
topology: v6e:2x2x1
jax: 0.10.0
libtpu: 0.0.40
codegen_flags: <defaults>
</compile_context>

<pallas_src>
import functools

import jax
import jax.numpy as jnp
from jax import lax
from jax.experimental import pallas as pl
from jax.experimental.pallas import tpu as pltpu


# ---------------------------------------------------------------------------
# Tiling helper
# ---------------------------------------------------------------------------
def _pick_tile(size, target, align):
    """Largest divisor of `size` that is <= target and a multiple of `align`.

    Falls back to the full dimension (which always satisfies Mosaic's block
    constraints) when no aligned divisor exists.
    """
    if size <= target:
        return size
    for t in range(min(target, size), 0, -1):
        if size % t == 0 and t % align == 0:
            return t
    return size


# ---------------------------------------------------------------------------
# Tiled matmul kernels (f32 accumulator, K-reduction as the last grid axis)
# ---------------------------------------------------------------------------
def _matmul_kernel(x_ref, w_ref, o_ref, acc_ref):
    @pl.when(pl.program_id(2) == 0)
    def _init():
        acc_ref[...] = jnp.zeros_like(acc_ref)

    acc_ref[...] += jnp.dot(
        x_ref[...], w_ref[...], preferred_element_type=jnp.float32
    )

    @pl.when(pl.program_id(2) == pl.num_programs(2) - 1)
    def _store():
        o_ref[...] = acc_ref[...].astype(o_ref.dtype)


def _matmul_bias_kernel(x_ref, w_ref, b_ref, o_ref, acc_ref):
    @pl.when(pl.program_id(2) == 0)
    def _init():
        acc_ref[...] = jnp.zeros_like(acc_ref)

    acc_ref[...] += jnp.dot(
        x_ref[...], w_ref[...], preferred_element_type=jnp.float32
    )

    @pl.when(pl.program_id(2) == pl.num_programs(2) - 1)
    def _store():
        # Bias fused into the epilogue (one broadcast per output tile).
        o_ref[...] = (acc_ref[...] + b_ref[...].astype(jnp.float32)).astype(o_ref.dtype)


def pallas_matmul(x, w, *, tm=256, tn=256, tk=512):
    m, k = x.shape
    _, n = w.shape
    tm = _pick_tile(m, tm, 8)
    tn = _pick_tile(n, tn, 128)
    tk = _pick_tile(k, tk, 128)
    return pl.pallas_call(
        _matmul_kernel,
        out_shape=jax.ShapeDtypeStruct((m, n), x.dtype),
        grid=(m // tm, n // tn, k // tk),
        in_specs=[
            pl.BlockSpec((tm, tk), lambda i, j, kk: (i, kk)),
            pl.BlockSpec((tk, tn), lambda i, j, kk: (kk, j)),
        ],
        out_specs=pl.BlockSpec((tm, tn), lambda i, j, kk: (i, j)),
        scratch_shapes=[pltpu.VMEM((tm, tn), jnp.float32)],
        compiler_params=pltpu.CompilerParams(
            dimension_semantics=("parallel", "parallel", "arbitrary")
        ),
    )(x, w)


def pallas_matmul_bias(x, w, b, *, tm=256, tn=256, tk=512):
    m, k = x.shape
    _, n = w.shape
    tm = _pick_tile(m, tm, 8)
    tn = _pick_tile(n, tn, 128)
    tk = _pick_tile(k, tk, 128)
    b2 = b.reshape(1, n)
    return pl.pallas_call(
        _matmul_bias_kernel,
        out_shape=jax.ShapeDtypeStruct((m, n), x.dtype),
        grid=(m // tm, n // tn, k // tk),
        in_specs=[
            pl.BlockSpec((tm, tk), lambda i, j, kk: (i, kk)),
            pl.BlockSpec((tk, tn), lambda i, j, kk: (kk, j)),
            pl.BlockSpec((1, tn), lambda i, j, kk: (0, j)),
        ],
        out_specs=pl.BlockSpec((tm, tn), lambda i, j, kk: (i, j)),
        scratch_shapes=[pltpu.VMEM((tm, tn), jnp.float32)],
        compiler_params=pltpu.CompilerParams(
            dimension_semantics=("parallel", "parallel", "arbitrary")
        ),
    )(x, w, b2)


# ---------------------------------------------------------------------------
# Attention kernel: one (batch, head, q-tile) step.
#   q: (tq, d)   k, v: (n, d)   out: (tq, d)
# ---------------------------------------------------------------------------
def _attn_kernel(q_ref, k_ref, v_ref, o_ref, *, scale):
    # Keep MXU inputs in their native dtype (bf16 runs at full MXU rate);
    # the softmax math happens on the f32 score accumulator.
    # Fold the softmax scale into q: O(tq*d) VPU work instead of O(tq*n).
    q = q_ref[...] * jnp.asarray(scale, dtype=q_ref.dtype)
    # q @ k^T via dot_general (contract last dims) -> no transposed K copy.
    s = lax.dot_general(
        q, k_ref[...],
        dimension_numbers=(((1,), (1,)), ((), ())),
        preferred_element_type=jnp.float32,
    )                                                     # (tq, n) f32
    s = s - jnp.max(s, axis=-1, keepdims=True)
    p = jnp.exp(s)
    inv = pl.reciprocal(jnp.sum(p, axis=-1, keepdims=True), approx=True)  # EUP slot
    p = (p * inv).astype(v_ref.dtype)
    o_ref[...] = jnp.dot(
        p, v_ref[...], preferred_element_type=jnp.float32
    ).astype(o_ref.dtype)


def pallas_attention_fused(qkv, heads, d_head, scale, *, tq_target=256):
    """Attention directly off the (b, n, 3*inner) qkv slab.

    Requires d_head % 128 == 0 so head column slices are lane-aligned blocks.
    Output is the lane-dense (b, n, inner) slab (no head transpose needed).
    """
    b, n, three_inner = qkv.shape
    inner = three_inner // 3
    tq = _pick_tile(n, tq_target, 8)
    kern = functools.partial(_attn_kernel, scale=scale)

    q_spec = pl.BlockSpec((None, tq, d_head), lambda bi, hi, qi: (bi, qi, hi))
    k_spec = pl.BlockSpec((None, n, d_head), lambda bi, hi, qi: (bi, 0, heads + hi))
    v_spec = pl.BlockSpec((None, n, d_head), lambda bi, hi, qi: (bi, 0, 2 * heads + hi))
    o_spec = pl.BlockSpec((None, tq, d_head), lambda bi, hi, qi: (bi, qi, hi))

    return pl.pallas_call(
        kern,
        out_shape=jax.ShapeDtypeStruct((b, n, inner), qkv.dtype),
        grid=(b, heads, n // tq),
        in_specs=[q_spec, k_spec, v_spec],
        out_specs=o_spec,
        compiler_params=pltpu.CompilerParams(
            # q-tile axis last & "arbitrary": K/V block index is constant over
            # it, so K/V stay resident across consecutive query tiles.
            dimension_semantics=("parallel", "parallel", "arbitrary")
        ),
    )(qkv, qkv, qkv)


def pallas_attention_heads(q, k, v, scale, *, tq_target=256):
    """Fallback on (b, h, n, d) tensors (used when d_head isn't lane aligned)."""
    b, h, n, d = q.shape
    tq = _pick_tile(n, tq_target, 8)
    kern = functools.partial(_attn_kernel, scale=scale)

    q_spec = pl.BlockSpec((None, None, tq, d), lambda bi, hi, qi: (bi, hi, qi, 0))
    kv_spec = pl.BlockSpec((None, None, n, d), lambda bi, hi, qi: (bi, hi, 0, 0))

    return pl.pallas_call(
        kern,
        out_shape=jax.ShapeDtypeStruct((b, h, n, d), q.dtype),
        grid=(b, h, n // tq),
        in_specs=[q_spec, kv_spec, kv_spec],
        out_specs=q_spec,
        compiler_params=pltpu.CompilerParams(
            dimension_semantics=("parallel", "parallel", "arbitrary")
        ),
    )(q, k, v)


# ---------------------------------------------------------------------------
# Full module forward (mask=None path)
# ---------------------------------------------------------------------------
def attention_forward(x, w_qkv, w_out, b_out, heads, dim):
    """x: (b, n, dim). w_qkv: (dim, 3*inner). w_out: (inner, dim). b_out: (dim,)."""
    b, n, _ = x.shape
    inner = w_qkv.shape[1] // 3
    d_head = inner // heads
    scale = float(dim) ** (-0.5)  # NOTE: PyTorch module scales by dim**-0.5 (not dim_head)

    x2 = x.reshape(b * n, dim)
    qkv = pallas_matmul(x2, w_qkv).reshape(b, n, 3 * inner)    # (b, n, 3*inner)

    if d_head % 128 == 0:
        # Head split + merge handled entirely by BlockSpec index maps.
        out = pallas_attention_fused(qkv, heads, d_head, scale)          # (b, n, inner)
    else:
        # Small / unaligned head dim: materialize (b, h, n, d) per-head layout.
        q, k, v = jnp.split(qkv, 3, axis=-1)
        to_heads = lambda t: t.reshape(b, n, heads, d_head).transpose(0, 2, 1, 3)
        out = pallas_attention_heads(to_heads(q), to_heads(k), to_heads(v), scale)
        out = out.transpose(0, 2, 1, 3).reshape(b, n, inner)             # (b, n, inner)

    out2 = pallas_matmul_bias(out.reshape(b * n, inner), w_out, b_out)   # (b*n, dim)
    return out2.reshape(b, n, dim)


# ---------------------------------------------------------------------------
# Pure-JAX reference (for the self-check)
# ---------------------------------------------------------------------------
def attention_reference(x, w_qkv, w_out, b_out, heads, dim):
    b, n, _ = x.shape
    inner = w_qkv.shape[1] // 3
    d_head = inner // heads
    scale = float(dim) ** (-0.5)
    qkv = x @ w_qkv
    q, k, v = jnp.split(qkv, 3, axis=-1)
    reh = lambda t: t.reshape(b, n, heads, d_head).transpose(0, 2, 1, 3)
    q, k, v = reh(q), reh(k), reh(v)
    dots = jnp.einsum("bhid,bhjd->bhij", q, k) * scale
    attn = jax.nn.softmax(dots, axis=-1)
    out = jnp.einsum("bhij,bhjd->bhid", attn, v)
    out = out.transpose(0, 2, 1, 3).reshape(b, n, inner)
    return out @ w_out + b_out


if __name__ == "__main__":
    key = jax.random.PRNGKey(0)

    def run_case(batch, seq, dim, heads, dim_head, subkey):
        inner = heads * dim_head
        kx, kq, ko, kb = jax.random.split(subkey, 4)
        x = jax.random.normal(kx, (batch, seq, dim), dtype=jnp.float32)
        # Shapes match nn.Linear params, stored transposed so forward is x @ W.
        w_qkv = jax.random.normal(kq, (dim, 3 * inner), dtype=jnp.float32) * 0.05
        w_out = jax.random.normal(ko, (inner, dim), dtype=jnp.float32) * 0.05
        b_out = jax.random.normal(kb, (dim,), dtype=jnp.float32) * 0.05

        y = jax.block_until_ready(
            attention_forward(x, w_qkv, w_out, b_out, heads, dim)
        )
        y_ref = attention_reference(x, w_qkv, w_out, b_out, heads, dim)
        assert y.shape == (batch, seq, dim)
        # Tolerance accounts for the approx (EUP) reciprocal in the softmax.
        assert jnp.allclose(y, y_ref, atol=1e-2, rtol=1e-2), "mismatch vs reference"

    k1, k2 = jax.random.split(key)
    # Lane-aligned head dim -> fully fused head split/merge via BlockSpec.
    run_case(batch=2, seq=8, dim=32, heads=2, dim_head=128, subkey=k1)
    # Small head dim -> fallback (b, h, n, d) path.
    run_case(batch=2, seq=8, dim=32, heads=4, dim_head=16, subkey=k2)

    print("KERNEL_OK")
</pallas_src>

<mosaic_0001>
module attributes {stable_mosaic.version = 11 : i64} {
  func.func @_matmul_kernel(%arg0: i32, %arg1: i32, %arg2: i32, %arg3: memref<16x32xf32, #tpu.memory_space<vmem>>, %arg4: memref<32x256xf32, #tpu.memory_space<vmem>>, %arg5: memref<16x256xf32, #tpu.memory_space<vmem>>, %arg6: memref<16x256xf32, #tpu.memory_space<vmem>>) attributes {dimension_semantics = [#tpu.dimension_semantics<parallel>, #tpu.dimension_semantics<parallel>, #tpu.dimension_semantics<arbitrary>], iteration_bounds = array<i64: 1, 3, 1>, scalar_prefetch = 0 : i64, scratch_operands = 1 : i64, tpu.core_type = #tpu.core_type<tc>, window_params = [{transform_indices = @transform_0, window_bounds = array<i64: 16, 32>}, {transform_indices = @transform_1, window_bounds = array<i64: 32, 256>}, {transform_indices = @transform_2, window_bounds = array<i64: 16, 256>}]} {
    %c0_i32 = arith.constant 0 : i32
    %0 = arith.cmpi eq, %arg2, %c0_i32 : i32
    %1 = arith.extui %0 : i1 to i32
    %c0_i32_0 = arith.constant 0 : i32
    %2 = arith.cmpi ne, %1, %c0_i32_0 : i32
    scf.if %2 {
      %cst_10 = arith.constant 0.000000e+00 : f32
      %12 = vector.broadcast %cst_10 : f32 to vector<16x256xf32>
      %c0_11 = arith.constant 0 : index
      %c0_12 = arith.constant 0 : index
      %13 = vector.load %arg6[%c0_11, %c0_12] : memref<16x256xf32, #tpu.memory_space<vmem>>, vector<16x256xf32>
      tpu.vector_store %arg6[%c0_11, %c0_12], %12 {strides = array<i32>} : memref<16x256xf32, #tpu.memory_space<vmem>>, vector<16x256xf32>,
    } else {
    }
    %c0 = arith.constant 0 : index
    %c0_1 = arith.constant 0 : index
    %3 = vector.load %arg6[%c0, %c0_1] : memref<16x256xf32, #tpu.memory_space<vmem>>, vector<16x256xf32>
    %c0_2 = arith.constant 0 : index
    %c0_3 = arith.constant 0 : index
    %4 = vector.load %arg3[%c0_2, %c0_3] : memref<16x32xf32, #tpu.memory_space<vmem>>, vector<16x32xf32>
    %c0_4 = arith.constant 0 : index
    %c0_5 = arith.constant 0 : index
    %5 = vector.load %arg4[%c0_4, %c0_5] : memref<32x256xf32, #tpu.memory_space<vmem>>, vector<32x256xf32>
    %cst = arith.constant dense<0.000000e+00> : vector<16x256xf32>
    %6 = tpu.matmul %4, %5, %cst {dimension_numbers = #tpu.dot_dimension_numbers<[1], [0], [0], [1], [0, 0, 1, 1], [], []>} : vector<16x32xf32>, vector<32x256xf32>, vector<16x256xf32> -> vector<16x256xf32>
    %7 = arith.addf %3, %6 : vector<16x256xf32>
    %c0_6 = arith.constant 0 : index
    %c0_7 = arith.constant 0 : index
    %8 = vector.load %arg6[%c0_6, %c0_7] : memref<16x256xf32, #tpu.memory_space<vmem>>, vector<16x256xf32>
    tpu.vector_store %arg6[%c0_6, %c0_7], %7 {strides = array<i32>} : memref<16x256xf32, #tpu.memory_space<vmem>>, vector<16x256xf32>,
    %c0_i32_8 = arith.constant 0 : i32
    %9 = arith.cmpi eq, %arg2, %c0_i32_8 : i32
    %10 = arith.extui %9 : i1 to i32
    %c0_i32_9 = arith.constant 0 : i32
    %11 = arith.cmpi ne, %10, %c0_i32_9 : i32
    scf.if %11 {
      %c0_10 = arith.constant 0 : index
      %c0_11 = arith.constant 0 : index
      %12 = vector.load %arg6[%c0_10, %c0_11] : memref<16x256xf32, #tpu.memory_space<vmem>>, vector<16x256xf32>
      %c0_12 = arith.constant 0 : index
      %c0_13 = arith.constant 0 : index
      %13 = vector.load %arg5[%c0_12, %c0_13] : memref<16x256xf32, #tpu.memory_space<vmem>>, vector<16x256xf32>
      tpu.vector_store %arg5[%c0_12, %c0_13], %12 {strides = array<i32>} : memref<16x256xf32, #tpu.memory_space<vmem>>, vector<16x256xf32>,
    } else {
    }
    return
  }
  func.func @transform_0(%arg0: i32, %arg1: i32, %arg2: i32) -> (i32, i32) {
    %c0_i32 = arith.constant 0 : i32
    return %arg0, %arg2 : i32, i32
  }
  func.func @transform_1(%arg0: i32, %arg1: i32, %arg2: i32) -> (i32, i32) {
    %c0_i32 = arith.constant 0 : i32
    return %arg2, %arg1 : i32, i32
  }
  func.func @transform_2(%arg0: i32, %arg1: i32, %arg2: i32) -> (i32, i32) {
    %c0_i32 = arith.constant 0 : i32
    return %arg0, %arg1 : i32, i32
  }
}

</mosaic_0001>

<llo_original>
// kernel: tpu_custom_call.1
$region0: #{tpu_custom_call.1}
  #allocation0 [shape = 'u32[]', space=smem, size = 0x4, offset = 0x4, fixed_abs, tag = 'smem constant byte address 0x4 - core index']
  #allocation1 [shape = 'u32[144,128]{1,0:T(1,128)}', space=vmem, size = 0x12000, scoped, tag = 'internal scratch']
  #allocation2 [shape = 'f32[16,256]{1,0:T(8,128)}', space=vmem, size = 0x4000, scoped, tag = 'scratch operand']
  %s0 = inlined_call_operand.hbm [shape: f32[16,32], index: 0, kind: input, shape index: {}]
  %s1 = inlined_call_operand.hbm [shape: f32[32,768], index: 1, kind: input, shape index: {}]
  %s2 = inlined_call_operand.hbm [shape: f32[16,768], index: 2, kind: output, shape index: {}]
  %s3 = sld [smem:[#allocation0]]
  $region57: #{tpu_custom_call.1} parent=0
    _
  %s5 = ssub.s32 1, %s3
  %s6 = scalar_select 0, %s5, %s3
  $region1: #{tpu_custom_call.1} parent=0
    #allocation3 [shape = 'u8[8192]{0}', space=vmem, size = 0x2000, scoped, tag = 'input window, operand 0, single buffered']
    #allocation4 [shape = 's32[2]{0}', space=sflag, size = 0x8, scoped, tag = 'scoped memory for tpu_custom_call.1']
    #allocation5 [shape = 's32[2]{0}', space=sflag, size = 0x8, scoped, tag = 'scoped memory for tpu_custom_call.1']
    #allocation6 [shape = 'u8[65536]{0}', space=vmem, size = 0x10000, scoped, tag = 'input window, operand 1']
    #allocation7 [shape = 's32[2]{0}', space=sflag, size = 0x8, scoped, tag = 'scoped memory for tpu_custom_call.1']
    #allocation8 [shape = 'u8[32768]{0}', space=vmem, size = 0x8000, scoped, tag = 'output window, operand 0']
    %7 = vsyncpa [#allocation4], 0
    %8 = vsyncpa [#allocation7], 0
    %s9 = scalar_lea.sflag [#allocation7], 1
    %10 = vsyncpa %s9, 0
    %11 = vsyncpa [#allocation5], 0
    %s12 = scalar_lea.sflag [#allocation5], 1
    %13 = vsyncpa %s12, 0
    loop: start=0, step=1, limit=5
    $region2: #{tpu_custom_call.1} parent=1 // loop_pre_header
      _
    $region3: #{tpu_custom_call.1} parent=1 // loop_header
      %s15 = sphi 0, %s19
      %p16 = scmp.ge.s32.totalorder %s15, 5
      %s22 = sphi 0, %s41
      %s23 = sphi 0, %s37
      %s24 = sphi 0, %s33
      %s25 = sphi 0, %s22
      %s26 = sphi 0, %s23
      %s27 = sphi 0, %s24
      %s28 = sphi 0, %s25
      %s29 = sphi 0, %s26
      %s30 = sphi 0, %s27
      %s46 = sphi 0, %s48
      %s49 = sphi 0, %s46
      %s50 = sphi 0, %s49
      %s66 = sphi 0, %s50
      %s74 = sphi 0, %s76
      %s77 = sphi 0, %s74
      %s78 = sphi 0, %s77
      %s94 = sphi 0, %s78
      %s102 = sphi 0, %s104
      %s105 = sphi 0, %s102
      %s106 = sphi 0, %s105
      %s122 = sphi 0, %s106
    $region4: #{tpu_custom_call.1} parent=1 // loop_header_branch
      %18 = sbr.rel (%p16) target = $region8
    $region5: #{tpu_custom_call.1} parent=1 // loop_body
      %s20 = ssub.s32 %s15, 1
      %s21 = ssub.s32 %s15, 2
      %s31 = sadd.s32 1, %s24
      %p32 = scmp.ge.s32.totalorder %s31, 1
      %s33 = scalar_select %p32, 0, %s31
      %s34 = sadd.s32 1, %s23
      %s35 = scalar_select %p32, %s34, %s23
      %p36 = scmp.ge.s32.totalorder %s35, 3
      %s37 = scalar_select %p36, 0, %s35
      %s38 = sadd.s32 1, %s22
      %s39 = scalar_select %p36, %s38, %s22
      %p40 = scmp.ge.s32.totalorder %s39, 1
      %s41 = scalar_select %p40, 0, %s39
      %s42 = ssub.s32 %s22, %s41
      %s43 = ssub.s32 %s24, %s33
      %s44 = sor.u32 %s42, %s43
      %p45 = scmp.eq.s32.totalorder %s44, 0
      %s47 = sadd.s32 %s46, 1
      %s48 = scalar_select %p45, %s46, %s47
      %p51 = pneg %p45
      %p52 = scmp.eq.s32.totalorder %s15, 2
      %p53 = por %p51, %p52
      %p54 = scmp.ne.s32.totalorder %s46, %s49
      %p55 = scmp.eq.s32.totalorder %s15, 0
      %p56 = por %p54, %p55
      %p57 = scmp.ne.s32.totalorder %s46, %s49
      %p58 = scmp.eq.s32.totalorder %s20, 2
      %p59 = por %p57, %p58
      %p60 = scmp.ne.s32.totalorder %s49, %s50
      %p61 = scmp.eq.s32.totalorder %s20, 0
      %p62 = por %p60, %p61
      %p63 = scmp.ne.s32.totalorder %s49, %s50
      %p64 = scmp.eq.s32.totalorder %s21, 2
      %p65 = por %p63, %p64
      %p67 = scmp.ne.s32.totalorder %s50, %s66
      %p68 = scmp.eq.s32.totalorder %s21, 0
      %p69 = por %p67, %p68
      %s70 = ssub.s32 %s24, %s33
      %s71 = ssub.s32 %s23, %s37
      %s72 = sor.u32 %s70, %s71
      %p73 = scmp.eq.s32.totalorder %s72, 0
      %s75 = sadd.s32 %s74, 1
      %s76 = scalar_select %p73, %s74, %s75
      %p79 = pneg %p73
      %p80 = scmp.eq.s32.totalorder %s15, 2
      %p81 = por %p79, %p80
      %p82 = scmp.ne.s32.totalorder %s74, %s77
      %p83 = scmp.eq.s32.totalorder %s15, 0
      %p84 = por %p82, %p83
      %p85 = scmp.ne.s32.totalorder %s74, %s77
      %p86 = scmp.eq.s32.totalorder %s20, 2
      %p87 = por %p85, %p86
      %p88 = scmp.ne.s32.totalorder %s77, %s78
      %p89 = scmp.eq.s32.totalorder %s20, 0
      %p90 = por %p88, %p89
      %p91 = scmp.ne.s32.totalorder %s77, %s78
      %p92 = scmp.eq.s32.totalorder %s21, 2
      %p93 = por %p91, %p92
      %p95 = scmp.ne.s32.totalorder %s78, %s94
      %p96 = scmp.eq.s32.totalorder %s21, 0
      %p97 = por %p95, %p96
      %s98 = ssub.s32 %s22, %s41
      %s99 = ssub.s32 %s23, %s37
      %s100 = sor.u32 %s98, %s99
      %p101 = scmp.eq.s32.totalorder %s100, 0
      %s103 = sadd.s32 %s102, 1
      %s104 = scalar_select %p101, %s102, %s103
      %p107 = pneg %p101
      %p108 = scmp.eq.s32.totalorder %s15, 2
      %p109 = por %p107, %p108
      %p110 = scmp.ne.s32.totalorder %s102, %s105
      %p111 = scmp.eq.s32.totalorder %s15, 0
      %p112 = por %p110, %p111
      %p113 = scmp.ne.s32.totalorder %s102, %s105
      %p114 = scmp.eq.s32.totalorder %s20, 2
      %p115 = por %p113, %p114
      %p116 = scmp.ne.s32.totalorder %s105, %s106
      %p117 = scmp.eq.s32.totalorder %s20, 0
      %p118 = por %p116, %p117
      %p119 = scmp.ne.s32.totalorder %s105, %s106
      %p120 = scmp.eq.s32.totalorder %s21, 2
      %p121 = por %p119, %p120
      %p123 = scmp.ne.s32.totalorder %s106, %s122
      %p124 = scmp.eq.s32.totalorder %s21, 0
      %p125 = por %p123, %p124
      %p126 = scmp.le.s32.totalorder 1, %s15
      %p127 = scmp.lt.s32.totalorder %s15, 4
      %p128 = pnand %p126, %p127
      %p129 = pneg %p128
      // Predicated region
      $region9: #{tpu_custom_call.1} parent=5 // pred_check
        _
      $region10: #{tpu_custom_call.1} parent=5 // pred_check_branch
        %131 = sbr.rel (%p128) target = $region12
      $region11: #{tpu_custom_call.1} parent=5 // pred_region
        %s132 = ssub.s32 %s15, 1
        // Predicated region
        $region13: #{tpu_custom_call.1} parent=11 // pred_check
          %p133 = pneg %p62
        $region14: #{tpu_custom_call.1} parent=11 // pred_check_branch
          %135 = sbr.rel (%p133) target = $region16
        $region15: #{tpu_custom_call.1} parent=11 // pred_region
          %s136 = smul.u32 2, %s25
          %s138 = ssub.s32 256, 256
          %139 = vsyncadd [#allocation4], %s138
          %s140 = sadd.s32 %s27, %s136
          %s141 = smul.addr %s140, 128
          %s142 = scalar_lea.hbm %s0, %s141
          %s143 = sshll.u32 [#allocation3], 4
          %s144 = int_to_ptr.vmem [resolvable:$true] %s143
          %149 = dma.hbm_to_vmem [thread:$0]  %s142, 256, %s144, [#allocation4], 128, 128, 8
        $region16: #{tpu_custom_call.1} parent=11 // pred_fallthru
          _
      $region12: #{tpu_custom_call.1} parent=5 // pred_fallthru
        _
      %p150 = scmp.lt.s32.totalorder %s15, 3
      // Predicated region
      $region17: #{tpu_custom_call.1} parent=5 // pred_check
        %p151 = pneg %p150
      $region18: #{tpu_custom_call.1} parent=5 // pred_check_branch
        %153 = sbr.rel (%p151) target = $region20
      $region19: #{tpu_custom_call.1} parent=5 // pred_region
        // Predicated region
        $region21: #{tpu_custom_call.1} parent=19 // pred_check
          %p154 = pneg %p84
        $region22: #{tpu_custom_call.1} parent=19 // pred_check_branch
          %156 = sbr.rel (%p154) target = $region24
        $region23: #{tpu_custom_call.1} parent=19 // pred_region
          %s157 = sand.u32 %s74, 1
          %s158 = scalar_lea.sflag [#allocation7], %s157
          %s159 = sand.u32 %s74, 1
          %s160 = smul.addr %s159, 64
          %s161 = scalar_lea.vmem [#allocation6], %s160
          %s162 = smul.u32 4, %s24
          %s163 = smul.u32 2, %s23
          %s165 = ssub.s32 1024, 1024
          %166 = vsyncadd %s158, %s165
          %s167 = smul.addr %s162, 6
          %s168 = sadd.s32 %s163, %s167
          %s169 = smul.addr %s168, 128
          %s170 = scalar_lea.hbm %s1, %s169
          %s171 = sshll.u32 %s161, 4
          %s172 = int_to_ptr.vmem [resolvable:$true] %s171
          %177 = dma.hbm_to_vmem [thread:$0]  %s170, 1024, %s172, %s158, 768, 256, 16
        $region24: #{tpu_custom_call.1} parent=19 // pred_fallthru
          _
      $region20: #{tpu_custom_call.1} parent=5 // pred_fallthru
        _
      %p178 = scmp.le.s32.totalorder 1, %s15
      %p179 = scmp.lt.s32.totalorder %s15, 4
      %p180 = pnand %p178, %p179
      %p181 = pneg %p180
      // Predicated region
      $region25: #{tpu_custom_call.1} parent=5 // pred_check
        _
      $region26: #{tpu_custom_call.1} parent=5 // pred_check_branch
        %183 = sbr.rel (%p180) target = $region28
      $region27: #{tpu_custom_call.1} parent=5 // pred_region
        %s184 = ssub.s32 %s15, 1
        // Predicated region
        $region29: #{tpu_custom_call.1} parent=27 // pred_check
          %p185 = pneg %p62
        $region30: #{tpu_custom_call.1} parent=27 // pred_check_branch
          %187 = sbr.rel (%p185) target = $region32
        $region31: #{tpu_custom_call.1} parent=27 // pred_region
          %188 = dma.done [#allocation4], 256
        $region32: #{tpu_custom_call.1} parent=27 // pred_fallthru
          _
        %s189 = sand.u32 %s77, 1
        %s190 = scalar_lea.sflag [#allocation7], %s189
        %s191 = sand.u32 %s77, 1
        %s192 = smul.addr %s191, 64
        %s193 = scalar_lea.vmem [#allocation6], %s192
        // Predicated region
        $region33: #{tpu_custom_call.1} parent=27 // pred_check
          %p194 = pneg %p90
        $region34: #{tpu_custom_call.1} parent=27 // pred_check_branch
          %196 = sbr.rel (%p194) target = $region36
        $region35: #{tpu_custom_call.1} parent=27 // pred_region
          %197 = dma.done %s190, 1024
        $region36: #{tpu_custom_call.1} parent=27 // pred_fallthru
          _
        %p198 = pneg %p62
        %p199 = pneg %p59
        %s200 = sand.u32 %s77, 1
        %s201 = scalar_lea.sflag [#allocation7], %s200
        %s202 = sand.u32 %s77, 1
        %s203 = smul.addr %s202, 64
        %s204 = scalar_lea.vmem [#allocation6], %s203
        %p205 = pneg %p90
        %p206 = pneg %p87
        %p207 = pneg %p118
        %p208 = pneg %p115
        %s209 = sand.u32 %s105, 1
        %s210 = scalar_lea.sflag [#allocation5], %s209
        %s211 = sand.u32 %s105, 1
        %s212 = smul.addr %s211, 32
        %s213 = scalar_lea.vmem [#allocation8], %s212
        %s214 = smul.u32 2, %s25
        %s215 = smul.u32 4, %s27
        %s216 = smul.u32 2, %s26
        %s217 = smul.u32 2, %s25
        %s218 = smul.u32 2, %s26
        %p219 = scmp.eq.s32.totalorder %s27, 0
        // Predicated region
        $region37: #{tpu_custom_call.1} parent=27 // pred_check
          %p220 = pneg %p219
        $region38: #{tpu_custom_call.1} parent=27 // pred_check_branch
          %222 = sbr.rel (%p220) target = $region40
        $region39: #{tpu_custom_call.1} parent=27 // pred_region
          %223 = vst [vmem:[#allocation2] sm:$0xff] 0.0
          %224 = vst [vmem:[#allocation2 + $0x8] sm:$0xff] 0.0
          %225 = vst [vmem:[#allocation2 + $0x10] sm:$0xff] 0.0
          %226 = vst [vmem:[#allocation2 + $0x18] sm:$0xff] 0.0
        $region40: #{tpu_custom_call.1} parent=27 // pred_fallthru
          _
        %v227 = vld [vmem:[#allocation2] sm:$0xff]
        %v228 = vld [vmem:[#allocation2 + $0x8] sm:$0xff]
        %v229 = vld [vmem:[#allocation2 + $0x10] sm:$0xff]
        %v230 = vld [vmem:[#allocation2 + $0x18] sm:$0xff]
        %v231 = vld [vmem:[#allocation3] sm:$0xff]
        %v232 = vld [vmem:[#allocation3 + $0x8] sm:$0xff]
        %v233 = vld [vmem:[%s193] sm:$0xff]
        %v234 = vld [vmem:[%s193 + $0x8] sm:$0xff]
        %v235 = vld [vmem:[%s193 + $0x10] sm:$0xff]
        %v236 = vld [vmem:[%s193 + $0x18] sm:$0xff]
        %v237 = vld [vmem:[%s193 + $0x20] sm:$0xff]
        %v238 = vld [vmem:[%s193 + $0x28] sm:$0xff]
        %v239 = vld [vmem:[%s193 + $0x30] sm:$0xff]
        %v240 = vld [vmem:[%s193 + $0x38] sm:$0xff]
        %vm241 = vcmask 261120
        %v243 = vsel %vm241, %v231, 0
        %v246 = vsel %vm241, %v232, 0
        %248 = vmatprep.subr.mxu0 0.0
        %249 = vmatpush1.msra.mxu0 0.0
        %250 = vmatprep.subr.mxu0 0.0
        %251 = vmatpush1.msra.mxu0 0.0
        %252 = vmatprep.subr.mxu0 0.0
        %253 = vmatpush1.msra.mxu0 0.0
        %254 = vmatprep.subr.mxu0 0.0
        %255 = vmatpush1.msra.mxu0 0.0
        %256 = vmatprep.subr.mxu0 0.0
        %257 = vmatpush1.msra.mxu0 0.0
        %258 = vmatprep.subr.mxu0 0.0
        %259 = vmatpush1.msra.mxu0 0.0
        %260 = vmatprep.subr.mxu0 0.0
        %261 = vmatpush1.msra.mxu0 0.0
        %262 = vmatprep.subr.mxu0 0.0
        %263 = vmatpush1.msra.mxu0 0.0
        %264 = vmatprep.subr.mxu0 0.0
        %265 = vmatpush1.msra.mxu0 0.0
        %266 = vmatprep.subr.mxu0 0.0
        %267 = vmatpush1.msra.mxu0 0.0
        %268 = vmatprep.subr.mxu0 0.0
        %269 = vmatpush1.msra.mxu0 0.0
        %270 = vmatprep.subr.mxu0 0.0
        %271 = vmatpush1.msra.mxu0 0.0
        %272 = vmatprep.subr.mxu0 %v240
        %273 = vmatpush1.msra.mxu0 %v239
        %274 = vmatprep.subr.mxu0 %v238
        %275 = vmatpush1.msra.mxu0 %v237
        %276 = vmatprep.subr.mxu0 %v236
        %277 = vmatpush1.msra.mxu0 %v235
        %278 = vmatprep.subr.mxu0 %v234
        %279 = vmatpush1.msra.mxu0 %v233
        %280 = vmatprep.subr.mxu0 0.0
        %281 = vmatpush2.msra.mxu0 0.0
        %282 = vmatprep.subr.mxu0 0.0
        %283 = vmatpush2.msra.mxu0 0.0
        %284 = vmatprep.subr.mxu0 0.0
        %285 = vmatpush2.msra.mxu0 0.0
        %286 = vmatprep.subr.mxu0 0.0
        %287 = vmatpush2.msra.mxu0 0.0
        %288 = vmatprep.subr.mxu0 0.0
        %289 = vmatpush2.msra.mxu0 0.0
        %290 = vmatprep.subr.mxu0 0.0
        %291 = vmatpush2.msra.mxu0 0.0
        %292 = vmatprep.subr.mxu0 0.0
        %293 = vmatpush2.msra.mxu0 0.0
        %294 = vmatprep.subr.mxu0 0.0
        %295 = vmatpush2.msra.mxu0 0.0
        %296 = vmatprep.subr.mxu0 0.0
        %297 = vmatpush2.msra.mxu0 0.0
        %298 = vmatprep.subr.mxu0 0.0
        %299 = vmatpush2.msra.mxu0 0.0
        %300 = vmatprep.subr.mxu0 0.0
        %301 = vmatpush2.msra.mxu0 0.0
        %302 = vmatprep.subr.mxu0 0.0
        %303 = vmatpush2.msra.mxu0 0.0
        %304 = vmatprep.subr.mxu0 0.0
        %305 = vmatpush2.msra.mxu0 0.0
        %306 = vmatprep.subr.mxu0 0.0
        %307 = vmatpush2.msra.mxu0 0.0
        %308 = vmatprep.subr.mxu0 0.0
        %309 = vmatpush2.msra.mxu0 0.0
        %310 = vmatprep.subr.mxu0 0.0
        %311 = vmatpush2.msra.mxu0 0.0
        %312 = vmatprep.mubr.f32.mxu0 0.0
        %313 = vmatmul.mubr.f32.gmra.mxu0 %v243
        %v314 = vpop.f32.mrf.mxu0
        %v315 = vadd.f32 0.0, %v314
        %v316 = vpop.f32.mrf.mxu0
        %v317 = vadd.f32 0.0, %v316
        %318 = vmatprep.mubr.f32.mxu0 0.0
        %319 = vmatmul.mubr.f32.gmra.mxu0 %v246
        %v320 = vpop.f32.mrf.mxu0
        %v321 = vadd.f32 0.0, %v320
        %v322 = vpop.f32.mrf.mxu0
        %v323 = vadd.f32 0.0, %v322
        %324 = vdwg.mxu0
        %v325 = vadd.f32 %v227, %v315
        %v326 = vadd.f32 %v228, %v317
        %v327 = vadd.f32 %v229, %v321
        %v328 = vadd.f32 %v230, %v323
        %329 = vst [vmem:[#allocation2] sm:$0xff] %v325
        %330 = vst [vmem:[#allocation2 + $0x8] sm:$0xff] %v326
        %331 = vst [vmem:[#allocation2 + $0x10] sm:$0xff] %v327
        %332 = vst [vmem:[#allocation2 + $0x18] sm:$0xff] %v328
        // Predicated region
        $region41: #{tpu_custom_call.1} parent=27 // pred_check
          %p333 = pneg %p219
        $region42: #{tpu_custom_call.1} parent=27 // pred_check_branch
          %335 = sbr.rel (%p333) target = $region44
        $region43: #{tpu_custom_call.1} parent=27 // pred_region
          %v336 = vld [vmem:[#allocation2] sm:$0xff]
          %v337 = vld [vmem:[#allocation2 + $0x8] sm:$0xff]
          %v338 = vld [vmem:[#allocation2 + $0x10] sm:$0xff]
          %v339 = vld [vmem:[#allocation2 + $0x18] sm:$0xff]
          %340 = vst [vmem:[%s213] sm:$0xff] %v336
          %341 = vst [vmem:[%s213 + $0x8] sm:$0xff] %v337
          %342 = vst [vmem:[%s213 + $0x10] sm:$0xff] %v338
          %343 = vst [vmem:[%s213 + $0x18] sm:$0xff] %v339
        $region44: #{tpu_custom_call.1} parent=27 // pred_fallthru
          _
        %s344 = sand.u32 %s105, 1
        %s345 = scalar_lea.sflag [#allocation5], %s344
        %s346 = sand.u32 %s105, 1
        %s347 = smul.addr %s346, 32
        %s348 = scalar_lea.vmem [#allocation8], %s347
        // Predicated region
        $region45: #{tpu_custom_call.1} parent=27 // pred_check
          %p349 = pneg %p115
        $region46: #{tpu_custom_call.1} parent=27 // pred_check_branch
          %351 = sbr.rel (%p349) target = $region48
        $region47: #{tpu_custom_call.1} parent=27 // pred_region
          %s352 = smul.u32 2, %s25
          %s353 = smul.u32 2, %s26
          %s355 = ssub.s32 512, 512
          %356 = vsyncadd %s345, %s355
          %s357 = smul.addr %s352, 6
          %s358 = sadd.s32 %s353, %s357
          %s359 = smul.addr %s358, 128
          %s360 = scalar_lea.hbm %s2, %s359
          %s361 = sshll.u32 %s348, 4
          %s362 = int_to_ptr.vmem [resolvable:$true] %s361
          %367 = dma.vmem_to_hbm [thread:$0]  %s362, 512, %s360, %s345, 256, 768, 16
        $region48: #{tpu_custom_call.1} parent=27 // pred_fallthru
          _
      $region28: #{tpu_custom_call.1} parent=5 // pred_fallthru
        _
      %p368 = scmp.le.s32.totalorder 2, %s15
      // Predicated region
      $region49: #{tpu_custom_call.1} parent=5 // pred_check
        %p369 = pneg %p368
      $region50: #{tpu_custom_call.1} parent=5 // pred_check_branch
        %371 = sbr.rel (%p369) target = $region52
      $region51: #{tpu_custom_call.1} parent=5 // pred_region
        %s372 = ssub.s32 %s15, 2
        // Predicated region
        $region53: #{tpu_custom_call.1} parent=51 // pred_check
          %p373 = pneg %p121
        $region54: #{tpu_custom_call.1} parent=51 // pred_check_branch
          %375 = sbr.rel (%p373) target = $region56
        $region55: #{tpu_custom_call.1} parent=51 // pred_region
          %s376 = sand.u32 %s106, 1
          %s377 = scalar_lea.sflag [#allocation5], %s376
          %s378 = sand.u32 %s106, 1
          %s379 = smul.addr %s378, 32
          %s380 = scalar_lea.vmem [#allocation8], %s379
          %381 = dma.done %s377, 512
        $region56: #{tpu_custom_call.1} parent=51 // pred_fallthru
          _
      $region52: #{tpu_custom_call.1} parent=5 // pred_fallthru
        _
    $region6: #{tpu_custom_call.1} parent=1 // loop_footer
      %s19 = sadd.s32 1, %s15
    $region7: #{tpu_custom_call.1} parent=1 // loop_footer_branch
      %14 = sbr.rel target = $region3
    $region8: #{tpu_custom_call.1} parent=1 // loop_exit
      _
    %382 = vsyncpa [#allocation4], 1
    %s383 = scalar_lea.sflag [#allocation4], 1
    %384 = vsyncpa %s383, 1
    %385 = vsyncpa [#allocation7], 1
    %s386 = scalar_lea.sflag [#allocation7], 1
    %387 = vsyncpa %s386, 1
    %388 = vsyncpa [#allocation5], 1
    %s389 = scalar_lea.sflag [#allocation5], 1
    %390 = vsyncpa %s389, 1

</llo_original>
